<compile_context>
chip_gen: v7x
topology: tpu7x:2x2x1
jax: 0.10.0
libtpu: 0.0.40
codegen_flags: <defaults>
</compile_context>

<pallas_src>
import functools

import jax
import jax.numpy as jnp
from jax.experimental import pallas as pl
from jax.experimental.pallas import tpu as pltpu


def _add_coords_kernel(x_ref, o_ref, *, C, H, W, TH, with_r):
    """One (batch, row-tile) block: x_ref (C, TH*W) -> o_ref (C+n_extra, TH*W)."""
    flat = TH * W

    # ---- pass-through copy of the original channels (lane-dense slab) ------
    o_ref[:C, :] = x_ref[...]

    # ---- coordinate channels, generated on-chip (no extra HBM reads) -------
    row0 = pl.program_id(1) * TH                       # first image row of tile
    k = jax.lax.broadcasted_iota(jnp.int32, (1, flat), 1)
    if W > 0 and (W & (W - 1)) == 0:                   # power-of-two fast path
        shift = W.bit_length() - 1
        col = (k & (W - 1)).astype(jnp.float32)        # j  (last spatial axis)
        row = (row0 + (k >> shift)).astype(jnp.float32)  # i (row axis)
    else:
        col = (k % W).astype(jnp.float32)
        row = (row0 + k // W).astype(jnp.float32)

    # PyTorch normalizers: xx uses (x_dim-1)=H-1, yy uses (y_dim-1)=W-1.
    # Degenerate H==W==1 gives NaN, matching the PyTorch original.
    inv_h = 2.0 / (H - 1) if H > 1 else float("nan")
    inv_w = 2.0 / (W - 1) if W > 1 else float("nan")
    xx = col * inv_h - 1.0                             # channel C
    yy = row * inv_w - 1.0                             # channel C+1
    o_ref[C:C + 1, :] = xx.astype(o_ref.dtype)
    o_ref[C + 1:C + 2, :] = yy.astype(o_ref.dtype)
    if with_r:
        rr = jnp.sqrt(xx * xx + yy * yy)               # channel C+2
        o_ref[C + 2:C + 3, :] = rr.astype(o_ref.dtype)


def _choose_row_block(B, C, n_extra, H, W, itemsize, *,
                      min_steps=8, vmem_cap=12 * 1024 * 1024):
    """Pick a row-tile height TH (a divisor of H) and optional VMEM limit.

    Priorities:
      1. lane-dense / (8,128) rule: (TH*W) % 128 == 0 or TH == H
      2. estimated per-step VMEM (double-buffered in+out blocks + coord
         temporaries) <= vmem_cap (safe for v5e's 16 MiB default scoped VMEM)
      3. B * (H // TH) >= min_steps (DMA pipelining + both v7x TensorCores)
    Among candidates meeting 1-3 take the largest TH; if 3 is unreachable take
    the smallest TH meeting 1-2 (maximise steps); if 2 is unreachable take the
    smallest lane-valid TH and return an explicit vmem_limit_bytes to request.
    """
    def per_step_bytes(th):
        flat = th * W
        blocks = 2 * (2 * C + n_extra) * flat * itemsize  # 2x: double-buffered in+out
        temps = 8 * flat * 4                              # iota/col/row/xx/yy/rr (f32)
        return blocks + temps

    cands = [th for th in range(1, H + 1)
             if H % th == 0 and ((th * W) % 128 == 0 or th == H)]
    fits = [th for th in cands if per_step_bytes(th) <= vmem_cap]
    if fits:
        enough = [th for th in fits if B * (H // th) >= min_steps]
        th = max(enough) if enough else min(fits)
        return th, None
    # No lane-valid divisor fits the budget (e.g. huge image with awkward H):
    # use the smallest valid tile and explicitly raise the scoped-VMEM limit.
    th = min(cands)
    needed = per_step_bytes(th) + (4 << 20)
    return th, max(needed, 32 << 20)


def add_coords(x, with_r=False, row_block=None):
    """Pallas forward of AddCoords. x is NCHW; returns (B, C+2(+1), H, W)."""
    B, C, H, W = x.shape
    assert H == W, "AddCoords (torch.cat in the original) requires H == W"
    n_extra = 3 if with_r else 2
    HW = H * W

    vmem_limit = None
    if row_block is None:
        row_block, vmem_limit = _choose_row_block(
            B, C, n_extra, H, W, x.dtype.itemsize)
    TH = row_block
    flat = TH * W

    x_flat = x.reshape(B, C, HW)                       # free: same row-major layout

    kernel = functools.partial(
        _add_coords_kernel, C=C, H=H, W=W, TH=TH, with_r=with_r)

    cparams = dict(dimension_semantics=("parallel", "parallel"))
    if vmem_limit is not None:
        cparams["vmem_limit_bytes"] = int(vmem_limit)

    out = pl.pallas_call(
        kernel,
        out_shape=jax.ShapeDtypeStruct((B, C + n_extra, HW), x.dtype),
        grid=(B, H // TH),
        in_specs=[pl.BlockSpec((None, C, flat), lambda b, h: (b, 0, h))],
        out_specs=pl.BlockSpec((None, C + n_extra, flat), lambda b, h: (b, 0, h)),
        compiler_params=pltpu.CompilerParams(**cparams),
    )(x_flat)

    return out.reshape(B, C + n_extra, H, W)


# ----------------------------- pure-JAX reference ----------------------------
def reference_add_coords(x, with_r=False):
    B, C, H, W = x.shape
    j = jnp.arange(W, dtype=jnp.float32)
    i = jnp.arange(H, dtype=jnp.float32)
    xx = (j / (H - 1)) * 2.0 - 1.0                    # PyTorch: x_dim normalizer
    yy = (i / (W - 1)) * 2.0 - 1.0                    # PyTorch: y_dim normalizer
    xx = jnp.broadcast_to(xx[None, None, None, :], (B, 1, H, W)).astype(x.dtype)
    yy = jnp.broadcast_to(yy[None, None, :, None], (B, 1, H, W)).astype(x.dtype)
    parts = [x, xx, yy]
    if with_r:
        parts.append(jnp.sqrt(xx * xx + yy * yy))
    return jnp.concatenate(parts, axis=1)


if __name__ == "__main__":
    B, C, H, W = 2, 4, 16, 16
    key = jax.random.PRNGKey(0)
    x = jax.random.normal(key, (B, C, H, W), jnp.float32)

    # with_r = False (module default)
    out = add_coords(x, with_r=False)
    jax.block_until_ready(out)
    ref = reference_add_coords(x, with_r=False)
    assert out.shape == (B, C + 2, H, W)
    assert jnp.allclose(out, ref, atol=1e-5, rtol=1e-5)

    # with_r = True
    out_r = add_coords(x, with_r=True)
    jax.block_until_ready(out_r)
    ref_r = reference_add_coords(x, with_r=True)
    assert out_r.shape == (B, C + 3, H, W)
    assert jnp.allclose(out_r, ref_r, atol=1e-5, rtol=1e-5)

    print("KERNEL_OK")
</pallas_src>

<mosaic_0001>
module attributes {stable_mosaic.version = 11 : i64} {
  func.func @_add_coords_kernel(%arg0: i32, %arg1: i32, %arg2: memref<1x4x128xf32, #tpu.memory_space<vmem>>, %arg3: memref<1x6x128xf32, #tpu.memory_space<vmem>>) attributes {dimension_semantics = [#tpu.dimension_semantics<parallel>, #tpu.dimension_semantics<parallel>], iteration_bounds = array<i64: 2, 2>, scalar_prefetch = 0 : i64, scratch_operands = 0 : i64, tpu.core_type = #tpu.core_type<tc>, window_params = [{transform_indices = @transform_0, window_bounds = array<i64: 1, 4, 128>}, {transform_indices = @transform_1, window_bounds = array<i64: 1, 6, 128>}]} {
    %c0 = arith.constant 0 : index
    %c0_0 = arith.constant 0 : index
    %c0_1 = arith.constant 0 : index
    %0 = vector.load %arg2[%c0, %c0_0, %c0_1] : memref<1x4x128xf32, #tpu.memory_space<vmem>>, vector<1x4x128xf32>
    %1 = vector.shape_cast %0 : vector<1x4x128xf32> to vector<4x128xf32>
    %c0_2 = arith.constant 0 : index
    %c0_3 = arith.constant 0 : index
    %c0_4 = arith.constant 0 : index
    %2 = vector.load %arg3[%c0_2, %c0_3, %c0_4] : memref<1x6x128xf32, #tpu.memory_space<vmem>>, vector<1x4x128xf32>
    %3 = vector.shape_cast %2 : vector<1x4x128xf32> to vector<4x128xf32>
    %4 = vector.shape_cast %1 : vector<4x128xf32> to vector<1x4x128xf32>
    tpu.vector_store %arg3[%c0_2, %c0_3, %c0_4], %4 {strides = array<i32>} : memref<1x6x128xf32, #tpu.memory_space<vmem>>, vector<1x4x128xf32>,
    %c8_i32 = arith.constant 8 : i32
    %5 = arith.muli %arg1, %c8_i32 : i32
    %6 = tpu.iota {dimensions = array<i32: 1>} : vector<1x128xi32>
    %c15_i32 = arith.constant 15 : i32
    %7 = vector.broadcast %c15_i32 : i32 to vector<1x128xi32>
    %8 = arith.andi %6, %7 : vector<1x128xi32>
    %9 = arith.sitofp %8 : vector<1x128xi32> to vector<1x128xf32>
    %c4_i32 = arith.constant 4 : i32
    %10 = vector.broadcast %c4_i32 : i32 to vector<1x128xi32>
    %11 = arith.shrsi %6, %10 : vector<1x128xi32>
    %12 = vector.broadcast %5 : i32 to vector<1x128xi32>
    %13 = arith.addi %12, %11 : vector<1x128xi32>
    %14 = arith.sitofp %13 : vector<1x128xi32> to vector<1x128xf32>
    %cst = arith.constant 0.13333334 : f32
    %15 = vector.broadcast %cst : f32 to vector<1x128xf32>
    %16 = arith.mulf %9, %15 : vector<1x128xf32>
    %cst_5 = arith.constant 1.000000e+00 : f32
    %17 = vector.broadcast %cst_5 : f32 to vector<1x128xf32>
    %18 = arith.subf %16, %17 : vector<1x128xf32>
    %cst_6 = arith.constant 0.13333334 : f32
    %19 = vector.broadcast %cst_6 : f32 to vector<1x128xf32>
    %20 = arith.mulf %14, %19 : vector<1x128xf32>
    %cst_7 = arith.constant 1.000000e+00 : f32
    %21 = vector.broadcast %cst_7 : f32 to vector<1x128xf32>
    %22 = arith.subf %20, %21 : vector<1x128xf32>
    %c0_8 = arith.constant 0 : index
    %c4 = arith.constant 4 : index
    %c0_9 = arith.constant 0 : index
    %23 = vector.load %arg3[%c0_8, %c4, %c0_9] : memref<1x6x128xf32, #tpu.memory_space<vmem>>, vector<1x1x128xf32>
    %24 = vector.shape_cast %23 : vector<1x1x128xf32> to vector<1x128xf32>
    %25 = vector.shape_cast %18 : vector<1x128xf32> to vector<1x1x128xf32>
    tpu.vector_store %arg3[%c0_8, %c4, %c0_9], %25 {strides = array<i32>} : memref<1x6x128xf32, #tpu.memory_space<vmem>>, vector<1x1x128xf32>,
    %c0_10 = arith.constant 0 : index
    %c5 = arith.constant 5 : index
    %c0_11 = arith.constant 0 : index
    %26 = vector.load %arg3[%c0_10, %c5, %c0_11] : memref<1x6x128xf32, #tpu.memory_space<vmem>>, vector<1x1x128xf32>
    %27 = vector.shape_cast %26 : vector<1x1x128xf32> to vector<1x128xf32>
    %28 = vector.shape_cast %22 : vector<1x128xf32> to vector<1x1x128xf32>
    tpu.vector_store %arg3[%c0_10, %c5, %c0_11], %28 {strides = array<i32>} : memref<1x6x128xf32, #tpu.memory_space<vmem>>, vector<1x1x128xf32>,
    return
  }
  func.func @transform_0(%arg0: i32, %arg1: i32) -> (i32, i32, i32) {
    %c0_i32 = arith.constant 0 : i32
    %c0_i32_0 = arith.constant 0 : i32
    return %arg0, %c0_i32, %arg1 : i32, i32, i32
  }
  func.func @transform_1(%arg0: i32, %arg1: i32) -> (i32, i32, i32) {
    %c0_i32 = arith.constant 0 : i32
    %c0_i32_0 = arith.constant 0 : i32
    return %arg0, %c0_i32, %arg1 : i32, i32, i32
  }
}

</mosaic_0001>

<llo_original>
// kernel: tpu_custom_call.1
$region0: #{tpu_custom_call.1}
  #allocation0 [shape = 'u32[]', space=smem, size = 0x4, offset = 0x4, fixed_abs, tag = 'smem constant byte address 0x4 - core index']
  #allocation1 [shape = 'u32[144,128]{1,0:T(1,128)}', space=vmem, size = 0x12000, scoped, tag = 'internal scratch']
  %s0 = inlined_call_operand.hbm [shape: f32[2,4,256], index: 0, kind: input, shape index: {}]
  %s1 = inlined_call_operand.vmem [shape: f32[2,6,256], index: 1, kind: output, shape index: {}]
  %s2 = sld [smem:[#allocation0]]
  $region41: #{tpu_custom_call.1} parent=0
    _
  %s4 = ssub.s32 1, %s2
  %s5 = scalar_select 0, %s4, %s2
  $region1: #{tpu_custom_call.1} parent=0
    #allocation2 [shape = 'u8[4096]{0}', space=vmem, size = 0x1000, scoped, tag = 'input window, operand 0']
    #allocation3 [shape = 's32[2]{0}', space=sflag, size = 0x8, scoped, tag = 'scoped memory for tpu_custom_call.1']
    %6 = vsyncpa [#allocation3], 0
    %s7 = scalar_lea.sflag [#allocation3], 1
    %8 = vsyncpa %s7, 0
    loop: start=0, step=1, limit=6
    $region2: #{tpu_custom_call.1} parent=1 // loop_pre_header
      _
    $region3: #{tpu_custom_call.1} parent=1 // loop_header
      %s10 = sphi 0, %s14
      %p11 = scmp.ge.s32.totalorder %s10, 6
      %s17 = sphi 0, %s29
      %s18 = sphi 0, %s25
      %s19 = sphi 0, %s17
      %s20 = sphi 0, %s18
      %s21 = sphi 0, %s19
      %s22 = sphi 0, %s20
      %s34 = sphi 0, %s36
      %s37 = sphi 0, %s34
      %s38 = sphi 0, %s37
      %s54 = sphi 0, %s38
      %s62 = sphi 0, %s64
      %s65 = sphi 0, %s62
      %s66 = sphi 0, %s65
      %s82 = sphi 0, %s66
    $region4: #{tpu_custom_call.1} parent=1 // loop_header_branch
      %13 = sbr.rel (%p11) target = $region8
    $region5: #{tpu_custom_call.1} parent=1 // loop_body
      %s15 = ssub.s32 %s10, 1
      %s16 = ssub.s32 %s10, 2
      %s23 = sadd.s32 1, %s18
      %p24 = scmp.ge.s32.totalorder %s23, 2
      %s25 = scalar_select %p24, 0, %s23
      %s26 = sadd.s32 1, %s17
      %s27 = scalar_select %p24, %s26, %s17
      %p28 = scmp.ge.s32.totalorder %s27, 2
      %s29 = scalar_select %p28, 0, %s27
      %s30 = ssub.s32 %s17, %s29
      %s31 = ssub.s32 %s18, %s25
      %s32 = sor.u32 %s30, %s31
      %p33 = scmp.eq.s32.totalorder %s32, 0
      %s35 = sadd.s32 %s34, 1
      %s36 = scalar_select %p33, %s34, %s35
      %p39 = pneg %p33
      %p40 = scmp.eq.s32.totalorder %s10, 3
      %p41 = por %p39, %p40
      %p42 = scmp.ne.s32.totalorder %s34, %s37
      %p43 = scmp.eq.s32.totalorder %s10, 0
      %p44 = por %p42, %p43
      %p45 = scmp.ne.s32.totalorder %s34, %s37
      %p46 = scmp.eq.s32.totalorder %s15, 3
      %p47 = por %p45, %p46
      %p48 = scmp.ne.s32.totalorder %s37, %s38
      %p49 = scmp.eq.s32.totalorder %s15, 0
      %p50 = por %p48, %p49
      %p51 = scmp.ne.s32.totalorder %s37, %s38
      %p52 = scmp.eq.s32.totalorder %s16, 3
      %p53 = por %p51, %p52
      %p55 = scmp.ne.s32.totalorder %s38, %s54
      %p56 = scmp.eq.s32.totalorder %s16, 0
      %p57 = por %p55, %p56
      %s58 = ssub.s32 %s17, %s29
      %s59 = ssub.s32 %s18, %s25
      %s60 = sor.u32 %s58, %s59
      %p61 = scmp.eq.s32.totalorder %s60, 0
      %s63 = sadd.s32 %s62, 1
      %s64 = scalar_select %p61, %s62, %s63
      %p67 = pneg %p61
      %p68 = scmp.eq.s32.totalorder %s10, 3
      %p69 = por %p67, %p68
      %p70 = scmp.ne.s32.totalorder %s62, %s65
      %p71 = scmp.eq.s32.totalorder %s10, 0
      %p72 = por %p70, %p71
      %p73 = scmp.ne.s32.totalorder %s62, %s65
      %p74 = scmp.eq.s32.totalorder %s15, 3
      %p75 = por %p73, %p74
      %p76 = scmp.ne.s32.totalorder %s65, %s66
      %p77 = scmp.eq.s32.totalorder %s15, 0
      %p78 = por %p76, %p77
      %p79 = scmp.ne.s32.totalorder %s65, %s66
      %p80 = scmp.eq.s32.totalorder %s16, 3
      %p81 = por %p79, %p80
      %p83 = scmp.ne.s32.totalorder %s66, %s82
      %p84 = scmp.eq.s32.totalorder %s16, 0
      %p85 = por %p83, %p84
      %p86 = scmp.le.s32.totalorder 1, %s10
      %p87 = scmp.lt.s32.totalorder %s10, 5
      %p88 = pnand %p86, %p87
      %p89 = pneg %p88
      // Predicated region
      $region9: #{tpu_custom_call.1} parent=5 // pred_check
        _
      $region10: #{tpu_custom_call.1} parent=5 // pred_check_branch
        %91 = sbr.rel (%p88) target = $region12
      $region11: #{tpu_custom_call.1} parent=5 // pred_region
        %s92 = ssub.s32 %s10, 1
      $region12: #{tpu_custom_call.1} parent=5 // pred_fallthru
        _
      %p93 = scmp.lt.s32.totalorder %s10, 4
      // Predicated region
      $region13: #{tpu_custom_call.1} parent=5 // pred_check
        %p94 = pneg %p93
      $region14: #{tpu_custom_call.1} parent=5 // pred_check_branch
        %96 = sbr.rel (%p94) target = $region16
      $region15: #{tpu_custom_call.1} parent=5 // pred_region
        // Predicated region
        $region17: #{tpu_custom_call.1} parent=15 // pred_check
          %p97 = pneg %p44
        $region18: #{tpu_custom_call.1} parent=15 // pred_check_branch
          %99 = sbr.rel (%p97) target = $region20
        $region19: #{tpu_custom_call.1} parent=15 // pred_region
          %s100 = sand.u32 %s34, 1
          %s101 = scalar_lea.sflag [#allocation3], %s100
          %s102 = sand.u32 %s34, 1
          %s103 = smul.addr %s102, 4
          %s104 = scalar_lea.vmem [#allocation2], %s103
          %s106 = ssub.s32 64, 64
          %107 = vsyncadd %s101, %s106
          %s108 = smul.addr %s17, 2
          %s109 = sadd.s32 %s18, %s108
          %s110 = smul.addr %s109, 64
          %s111 = scalar_lea.hbm %s0, %s110
          %s113 = sshll.u32 %s104, 4
          %s114 = int_to_ptr.vmem [resolvable:$true] %s113
          %116 = dma.hbm_to_vmem [thread:$0]  %s111, 64, %s114, %s101
        $region20: #{tpu_custom_call.1} parent=15 // pred_fallthru
          _
      $region16: #{tpu_custom_call.1} parent=5 // pred_fallthru
        _
      %p117 = scmp.le.s32.totalorder 1, %s10
      %p118 = scmp.lt.s32.totalorder %s10, 5
      %p119 = pnand %p117, %p118
      %p120 = pneg %p119
      // Predicated region
      $region21: #{tpu_custom_call.1} parent=5 // pred_check
        _
      $region22: #{tpu_custom_call.1} parent=5 // pred_check_branch
        %122 = sbr.rel (%p119) target = $region24
      $region23: #{tpu_custom_call.1} parent=5 // pred_region
        %s123 = ssub.s32 %s10, 1
        %s124 = sand.u32 %s37, 1
        %s125 = scalar_lea.sflag [#allocation3], %s124
        %s126 = sand.u32 %s37, 1
        %s127 = smul.addr %s126, 4
        %s128 = scalar_lea.vmem [#allocation2], %s127
        // Predicated region
        $region25: #{tpu_custom_call.1} parent=23 // pred_check
          %p129 = pneg %p50
        $region26: #{tpu_custom_call.1} parent=23 // pred_check_branch
          %131 = sbr.rel (%p129) target = $region28
        $region27: #{tpu_custom_call.1} parent=23 // pred_region
          %132 = dma.done %s125, 64
        $region28: #{tpu_custom_call.1} parent=23 // pred_fallthru
          _
        %s133 = sand.u32 %s37, 1
        %s134 = scalar_lea.sflag [#allocation3], %s133
        %s135 = sand.u32 %s37, 1
        %s136 = smul.addr %s135, 4
        %s137 = scalar_lea.vmem [#allocation2], %s136
        %p138 = pneg %p50
        %p139 = pneg %p47
        %p140 = pneg %p78
        %p141 = pneg %p75
        %p142 = scmp.lt.s32.totalorder %s19, 1
        %s143 = scalar_select %p142, %s19, 1
        %p144 = scmp.lt.s32.totalorder %s20, 1
        %s145 = scalar_select %p144, %s20, 1
        %s146 = smul.addr %s143, 2
        %s147 = sadd.s32 %s145, %s146
        %s148 = smul.addr %s147, 8
        %s149 = scalar_lea.vmem %s1, %s148
        %p150 = scmp.lt.s32.totalorder %s19, 1
        %s151 = scalar_select %p150, %s19, 1
        %p152 = scmp.lt.s32.totalorder %s20, 1
        %s153 = scalar_select %p152, %s20, 1
        %s154 = smul.addr %s151, 2
        %s155 = sadd.s32 %s153, %s154
        %s156 = smul.addr %s155, 8
        %s157 = scalar_lea.vmem %s1, %s156
        %v158 = vld [vmem:[%s128] sm:$0xf]
        %159 = vst [vmem:[%s157] sm:$0xf] %v158
        %s160 = smul.u32 %s20, 8
        %v161 = vlaneseq
        %v162 = vand.u32 %v161, 127
        %v163 = vand.u32 %v162, 15
        %v164 = vcvt.s32.f32 %v163
        %v165 = vshra.s32 %v162, 4
        %v166 = vstv %s160
        %v167 = vadd.s32 %v166, %v165
        %v168 = vcvt.s32.f32 %v167
        %v169 = vmul.f32 %v164, 0.13333334
        %v170 = vsub.f32 %v169, 1.0
        %v171 = vmul.f32 %v168, 0.13333334
        %v172 = vsub.f32 %v171, 1.0
        %173 = vst [vmem:[%s157 + $0x4] sm:$0x1] %v170
        %174 = vst [vmem:[%s157 + $0x5] sm:$0x1] %v172
        %p175 = scmp.lt.s32.totalorder %s19, 1
        %s176 = scalar_select %p175, %s19, 1
        %p177 = scmp.lt.s32.totalorder %s20, 1
        %s178 = scalar_select %p177, %s20, 1
        %s179 = smul.addr %s176, 2
        %s180 = sadd.s32 %s178, %s179
        %s181 = smul.addr %s180, 8
        %s182 = scalar_lea.vmem %s1, %s181
        // Predicated region
        $region29: #{tpu_custom_call.1} parent=23 // pred_check
          %p183 = pneg %p75
        $region30: #{tpu_custom_call.1} parent=23 // pred_check_branch
          %185 = sbr.rel (%p183) target = $region32
        $region31: #{tpu_custom_call.1} parent=23 // pred_region
          _
        $region32: #{tpu_custom_call.1} parent=23 // pred_fallthru
          _
      $region24: #{tpu_custom_call.1} parent=5 // pred_fallthru
        _
      %p186 = scmp.le.s32.totalorder 2, %s10
      // Predicated region
      $region33: #{tpu_custom_call.1} parent=5 // pred_check
        %p187 = pneg %p186
      $region34: #{tpu_custom_call.1} parent=5 // pred_check_branch
        %189 = sbr.rel (%p187) target = $region36
      $region35: #{tpu_custom_call.1} parent=5 // pred_region
        %s190 = ssub.s32 %s10, 2
        // Predicated region
        $region37: #{tpu_custom_call.1} parent=35 // pred_check
          %p191 = pneg %p81
        $region38: #{tpu_custom_call.1} parent=35 // pred_check_branch
          %193 = sbr.rel (%p191) target = $region40
        $region39: #{tpu_custom_call.1} parent=35 // pred_region
          %p194 = scmp.lt.s32.totalorder %s21, 1
          %s195 = scalar_select %p194, %s21, 1
          %p196 = scmp.lt.s32.totalorder %s22, 1
          %s197 = scalar_select %p196, %s22, 1
          %s198 = smul.addr %s195, 2
          %s199 = sadd.s32 %s197, %s198
          %s200 = smul.addr %s199, 8
          %s201 = scalar_lea.vmem %s1, %s200
        $region40: #{tpu_custom_call.1} parent=35 // pred_fallthru
          _
      $region36: #{tpu_custom_call.1} parent=5 // pred_fallthru
        _
    $region6: #{tpu_custom_call.1} parent=1 // loop_footer
      %s14 = sadd.s32 1, %s10
    $region7: #{tpu_custom_call.1} parent=1 // loop_footer_branch
      %9 = sbr.rel target = $region3
    $region8: #{tpu_custom_call.1} parent=1 // loop_exit
      _
    %202 = vsyncpa [#allocation3], 1
    %s203 = scalar_lea.sflag [#allocation3], 1
    %204 = vsyncpa %s203, 1

</llo_original>
